<compile_context>
chip_gen: v6e
topology: v6e:2x2x1
jax: 0.10.0
libtpu: 0.0.40
codegen_flags: <defaults>
</compile_context>

<pallas_src>
import math
import jax
import jax.numpy as jnp
from jax.experimental import pallas as pl
from jax.experimental.pallas import tpu as pltpu


def _round_up(x, m):
    return ((x + m - 1) // m) * m


def _pad2(a, rows, cols, dtype):
    a = a.astype(dtype)
    pr, pc = rows - a.shape[0], cols - a.shape[1]
    if pr or pc:
        a = jnp.pad(a, ((0, pr), (0, pc)))
    return a


def _vmem_limit_bytes():
    """Chip-aware VMEM limit: physical capacity minus headroom, with a safe fallback."""
    cap = None
    try:
        info = pltpu.get_tpu_info()
        for name in ("vmem_capacity_bytes", "vmem_size_bytes", "vmem_bytes"):
            cap = getattr(info, name, None)
            if cap:
                break
    except Exception:
        cap = None
    if not cap:
        cap = 64 * 1024 * 1024  # conservative default (fits every generation)
    # Leave headroom for Mosaic internal scratch: ~48 MiB on v7x, ~112 MiB on v5e/v6e.
    return max(32 * 1024 * 1024, int(cap) - 16 * 1024 * 1024)


def ffn_kernel(x_ref, w1_ref, b1_ref, w2_ref, b2_ref, o_ref):
    # grid = (M tiles [parallel], d_ff slabs [arbitrary / reduction]).
    # o_ref's block index is constant over k, so it stays VMEM-resident across the
    # reduction and doubles as the f32 accumulator (no scratch needed).
    k = pl.program_id(1)

    @pl.when(k == 0)
    def _():
        o_ref[...] = jnp.broadcast_to(b1_ref.dtype.type(0) + b2_ref[...],
                                      o_ref.shape).astype(o_ref.dtype)

    # (tm, d_model_p) @ (d_model_p, tk) on the MXU, f32 accumulation.
    h = jnp.dot(x_ref[...], w1_ref[...], preferred_element_type=jnp.float32)
    h = jnp.maximum(h + b1_ref[...], 0.0)  # bias + ReLU in f32 on the VPU
    # TODO(synk): dropout is identity here (eval-mode semantics); training-mode dropout
    #             would use pltpu.prng_seed + pltpu.stateful_bernoulli for the mask.
    # (tm, tk) @ (tk, d_model_p), accumulated across the d_ff slabs directly in o_ref.
    o_ref[...] += jnp.dot(h.astype(w2_ref.dtype), w2_ref[...],
                          preferred_element_type=jnp.float32)


def prepare_ffn_params(w1, b1, w2, b2):
    """One-time cast-to-bf16 + 128-padding of the weights (hoisted out of the forward)."""
    d_model, d_ff = w1.shape
    d_model_p = _round_up(d_model, 128)
    d_ff_p = _round_up(d_ff, 128)
    return dict(
        w1=_pad2(w1, d_model_p, d_ff_p, jnp.bfloat16),
        b1=_pad2(b1.reshape(1, -1), 1, d_ff_p, jnp.float32),
        w2=_pad2(w2, d_ff_p, d_model_p, jnp.bfloat16),
        b2=_pad2(b2.reshape(1, -1), 1, d_model_p, jnp.float32),
        d_model=d_model, d_ff=d_ff, d_model_p=d_model_p, d_ff_p=d_ff_p,
    )


def feed_forward(x, params, *, tm=512, tk_ff=512):
    """x: (batch, seq, d_model). Returns same shape/dtype (f32 accumulation inside)."""
    batch, seq, d_model = x.shape
    assert d_model == params["d_model"]
    d_model_p, d_ff_p = params["d_model_p"], params["d_ff_p"]
    M = batch * seq

    vmem_limit = _vmem_limit_bytes()
    budget = int(0.85 * vmem_limit)

    # ---- M tiling (sublane-friendly multiple of 16; padded rows sliced off later) ----
    M16 = _round_up(M, 16)
    tm = max(16, _round_up(min(int(tm), M16), 16))
    # Megacore (v7x): make sure there are >= 2 M tiles when there is enough work.
    if M >= 512 and tm >= M16:
        tm = _round_up((M + 1) // 2, 16)
    # Keep the double-buffered x (bf16) + out (f32) tiles within half the budget.
    while tm > 128 and 2 * tm * d_model_p * (2 + 4) > budget // 2:
        tm = max(128, tm // 2)
    M_p = _round_up(M, tm)

    # ---- d_ff tiling: round d_ff to 128 first, then pick tk as a divisor of d_ff_p ----
    io_bytes = 2 * tm * d_model_p * (2 + 4)            # x bf16 + out f32, double-buffered
    w_resident_bytes = 2 * (d_model_p * d_ff_p * 2) * 2  # W1+W2 bf16, 2 buffers (conservative)
    if w_resident_bytes + io_bytes <= budget:
        tk = d_ff_p                                    # weights fully VMEM-resident, 1 k-step
    else:
        slab_budget = max(0, budget - io_bytes)
        tk_by_vmem = max(128, slab_budget // (8 * d_model_p))   # 2 bufs x (W1 + W2) slabs
        tk_cap = max(128, (min(int(tk_ff), tk_by_vmem, d_ff_p) // 128) * 128)
        n = d_ff_p // 128
        tk = 128
        for d in range(1, n + 1):                      # largest 128-mult divisor of d_ff_p
            if n % d == 0 and d * 128 <= tk_cap:
                tk = d * 128

    grid = (M_p // tm, d_ff_p // tk)

    x2d = _pad2(x.reshape(M, d_model), M_p, d_model_p, jnp.bfloat16)

    out2d = pl.pallas_call(
        ffn_kernel,
        out_shape=jax.ShapeDtypeStruct((M_p, d_model_p), jnp.float32),
        grid_spec=pltpu.PrefetchScalarGridSpec(
            num_scalar_prefetch=0,
            grid=grid,
            in_specs=[
                pl.BlockSpec((tm, d_model_p), lambda i, k: (i, 0)),   # x tile
                pl.BlockSpec((d_model_p, tk), lambda i, k: (0, k)),   # W1 slab (const if tk==d_ff_p)
                pl.BlockSpec((1, tk),         lambda i, k: (0, k)),   # b1 slab
                pl.BlockSpec((tk, d_model_p), lambda i, k: (k, 0)),   # W2 slab
                pl.BlockSpec((1, d_model_p),  lambda i, k: (0, 0)),   # b2
            ],
            out_specs=pl.BlockSpec((tm, d_model_p), lambda i, k: (i, 0)),
        ),
        compiler_params=pltpu.CompilerParams(
            dimension_semantics=("parallel", "arbitrary"),
            vmem_limit_bytes=vmem_limit,
        ),
    )(x2d, params["w1"], params["b1"], params["w2"], params["b2"])

    return out2d[:M, :d_model].reshape(batch, seq, d_model).astype(x.dtype)


def init_params(key, d_model, d_ff):
    """Deterministic init mimicking nn.Linear's uniform(-1/sqrt(fan_in), 1/sqrt(fan_in))."""
    k1, k2, k3, k4 = jax.random.split(key, 4)
    bound1 = 1.0 / math.sqrt(d_model)
    bound2 = 1.0 / math.sqrt(d_ff)
    w1 = jax.random.uniform(k1, (d_model, d_ff), jnp.float32, -bound1, bound1)
    b1 = jax.random.uniform(k2, (1, d_ff), jnp.float32, -bound1, bound1)
    w2 = jax.random.uniform(k3, (d_ff, d_model), jnp.float32, -bound2, bound2)
    b2 = jax.random.uniform(k4, (1, d_model), jnp.float32, -bound2, bound2)
    return w1, b1, w2, b2


def ref_ffn(x, w1, b1, w2, b2):
    """Plain-JAX f32 reference (dropout is identity in eval)."""
    b, s, dm = x.shape
    h = jnp.maximum(x.reshape(-1, dm) @ w1 + b1, 0.0)
    return (h @ w2 + b2).reshape(b, s, dm)


if __name__ == "__main__":
    key = jax.random.PRNGKey(0)
    k1, k2, k3, k4, k5, k6 = jax.random.split(key, 6)

    # Test 1: small shapes implied by the module (batch=2, seq=8, d_model=32, d_ff=64).
    batch, seq, d_model, d_ff = 2, 8, 32, 64
    x = jax.random.normal(k1, (batch, seq, d_model), jnp.float32)
    w1, b1, w2, b2 = init_params(k2, d_model, d_ff)
    params = prepare_ffn_params(w1, b1, w2, b2)
    out = jax.block_until_ready(feed_forward(x, params))
    ref = ref_ffn(x, w1, b1, w2, b2)
    assert out.shape == (batch, seq, d_model)
    assert jnp.allclose(out, ref, atol=5e-2, rtol=5e-2), float(jnp.max(jnp.abs(out - ref)))

    # Test 2: shapes that exercise the M tiling (grid[0] == 2 for megacore).
    batch, seq, d_model, d_ff = 4, 128, 128, 512
    x = jax.random.normal(k3, (batch, seq, d_model), jnp.float32)
    w1, b1, w2, b2 = init_params(k4, d_model, d_ff)
    params = prepare_ffn_params(w1, b1, w2, b2)
    out = jax.block_until_ready(feed_forward(x, params))
    ref = ref_ffn(x, w1, b1, w2, b2)
    assert out.shape == (batch, seq, d_model)
    assert jnp.allclose(out, ref, atol=5e-2, rtol=5e-2), float(jnp.max(jnp.abs(out - ref)))

    # Test 3: ragged dims that exercise M / d_model / d_ff zero-padding paths.
    batch, seq, d_model, d_ff = 3, 40, 96, 272
    x = jax.random.normal(k5, (batch, seq, d_model), jnp.float32)
    w1, b1, w2, b2 = init_params(k6, d_model, d_ff)
    params = prepare_ffn_params(w1, b1, w2, b2)
    out = jax.block_until_ready(feed_forward(x, params))
    ref = ref_ffn(x, w1, b1, w2, b2)
    assert out.shape == (batch, seq, d_model)
    assert jnp.allclose(out, ref, atol=5e-2, rtol=5e-2), float(jnp.max(jnp.abs(out - ref)))

    print("KERNEL_OK")
</pallas_src>

<mosaic_0001>
module attributes {stable_mosaic.version = 11 : i64} {
  func.func @ffn_kernel(%arg0: i32, %arg1: i32, %arg2: memref<16x128xbf16, #tpu.memory_space<vmem>>, %arg3: memref<128x128xbf16, #tpu.memory_space<vmem>>, %arg4: memref<1x128xf32, #tpu.memory_space<vmem>>, %arg5: memref<128x128xbf16, #tpu.memory_space<vmem>>, %arg6: memref<1x128xf32, #tpu.memory_space<vmem>>, %arg7: memref<16x128xf32, #tpu.memory_space<vmem>>) attributes {dimension_semantics = [#tpu.dimension_semantics<parallel>, #tpu.dimension_semantics<arbitrary>], iteration_bounds = array<i64: 1, 1>, scalar_prefetch = 0 : i64, scratch_operands = 0 : i64, tpu.core_type = #tpu.core_type<tc>, window_params = [{transform_indices = @transform_0, window_bounds = array<i64: 16, 128>}, {transform_indices = @transform_1, window_bounds = array<i64: 128, 128>}, {transform_indices = @transform_2, window_bounds = array<i64: 1, 128>}, {transform_indices = @transform_3, window_bounds = array<i64: 128, 128>}, {pipeline_mode = #tpu.pipeline_mode<synchronous>, transform_indices = @transform_4, window_bounds = array<i64: 1, 128>}, {transform_indices = @transform_5, window_bounds = array<i64: 16, 128>}]} {
    %c0_i32 = arith.constant 0 : i32
    %0 = arith.cmpi eq, %arg1, %c0_i32 : i32
    %1 = arith.extui %0 : i1 to i32
    %c0_i32_0 = arith.constant 0 : i32
    %2 = arith.cmpi ne, %1, %c0_i32_0 : i32
    scf.if %2 {
      %c0_14 = arith.constant 0 : index
      %c0_15 = arith.constant 0 : index
      %17 = vector.load %arg6[%c0_14, %c0_15] : memref<1x128xf32, #tpu.memory_space<vmem>>, vector<1x128xf32>
      %cst_16 = arith.constant 0.000000e+00 : f32
      %18 = vector.broadcast %cst_16 : f32 to vector<1x128xf32>
      %19 = arith.addf %18, %17 : vector<1x128xf32>
      %20 = vector.shape_cast %19 : vector<1x128xf32> to vector<1x128xf32>
      %21 = vector.broadcast %20 : vector<1x128xf32> to vector<16x128xf32>
      %c0_17 = arith.constant 0 : index
      %c0_18 = arith.constant 0 : index
      %22 = vector.load %arg7[%c0_17, %c0_18] : memref<16x128xf32, #tpu.memory_space<vmem>>, vector<16x128xf32>
      tpu.vector_store %arg7[%c0_17, %c0_18], %21 {strides = array<i32>} : memref<16x128xf32, #tpu.memory_space<vmem>>, vector<16x128xf32>,
    } else {
    }
    %c0 = arith.constant 0 : index
    %c0_1 = arith.constant 0 : index
    %3 = vector.load %arg2[%c0, %c0_1] : memref<16x128xbf16, #tpu.memory_space<vmem>>, vector<16x128xbf16>
    %c0_2 = arith.constant 0 : index
    %c0_3 = arith.constant 0 : index
    %4 = vector.load %arg3[%c0_2, %c0_3] : memref<128x128xbf16, #tpu.memory_space<vmem>>, vector<128x128xbf16>
    %cst = arith.constant dense<0.000000e+00> : vector<16x128xf32>
    %5 = tpu.matmul %3, %4, %cst {dimension_numbers = #tpu.dot_dimension_numbers<[1], [0], [0], [1], [0, 0, 1, 1], [], []>} : vector<16x128xbf16>, vector<128x128xbf16>, vector<16x128xf32> -> vector<16x128xf32>
    %c0_4 = arith.constant 0 : index
    %c0_5 = arith.constant 0 : index
    %6 = vector.load %arg4[%c0_4, %c0_5] : memref<1x128xf32, #tpu.memory_space<vmem>>, vector<1x128xf32>
    %7 = vector.broadcast %6 : vector<1x128xf32> to vector<16x128xf32>
    %8 = arith.addf %5, %7 : vector<16x128xf32>
    %cst_6 = arith.constant 0.000000e+00 : f32
    %9 = vector.broadcast %cst_6 : f32 to vector<16x128xf32>
    %10 = arith.maximumf %8, %9 : vector<16x128xf32>
    %c0_7 = arith.constant 0 : index
    %c0_8 = arith.constant 0 : index
    %11 = vector.load %arg7[%c0_7, %c0_8] : memref<16x128xf32, #tpu.memory_space<vmem>>, vector<16x128xf32>
    %12 = arith.truncf %10 : vector<16x128xf32> to vector<16x128xbf16>
    %c0_9 = arith.constant 0 : index
    %c0_10 = arith.constant 0 : index
    %13 = vector.load %arg5[%c0_9, %c0_10] : memref<128x128xbf16, #tpu.memory_space<vmem>>, vector<128x128xbf16>
    %cst_11 = arith.constant dense<0.000000e+00> : vector<16x128xf32>
    %14 = tpu.matmul %12, %13, %cst_11 {dimension_numbers = #tpu.dot_dimension_numbers<[1], [0], [0], [1], [0, 0, 1, 1], [], []>} : vector<16x128xbf16>, vector<128x128xbf16>, vector<16x128xf32> -> vector<16x128xf32>
    %15 = arith.addf %11, %14 : vector<16x128xf32>
    %c0_12 = arith.constant 0 : index
    %c0_13 = arith.constant 0 : index
    %16 = vector.load %arg7[%c0_12, %c0_13] : memref<16x128xf32, #tpu.memory_space<vmem>>, vector<16x128xf32>
    tpu.vector_store %arg7[%c0_12, %c0_13], %15 {strides = array<i32>} : memref<16x128xf32, #tpu.memory_space<vmem>>, vector<16x128xf32>,
    return
  }
  func.func @transform_0(%arg0: i32, %arg1: i32) -> (i32, i32) {
    %c0_i32 = arith.constant 0 : i32
    %c0_i32_0 = arith.constant 0 : i32
    return %arg0, %c0_i32 : i32, i32
  }
  func.func @transform_1(%arg0: i32, %arg1: i32) -> (i32, i32) {
    %c0_i32 = arith.constant 0 : i32
    %c0_i32_0 = arith.constant 0 : i32
    return %c0_i32, %arg1 : i32, i32
  }
  func.func @transform_2(%arg0: i32, %arg1: i32) -> (i32, i32) {
    %c0_i32 = arith.constant 0 : i32
    %c0_i32_0 = arith.constant 0 : i32
    return %c0_i32, %arg1 : i32, i32
  }
  func.func @transform_3(%arg0: i32, %arg1: i32) -> (i32, i32) {
    %c0_i32 = arith.constant 0 : i32
    %c0_i32_0 = arith.constant 0 : i32
    return %arg1, %c0_i32 : i32, i32
  }
  func.func @transform_4(%arg0: i32, %arg1: i32) -> (i32, i32) {
    %c0_i32 = arith.constant 0 : i32
    %c0_i32_0 = arith.constant 0 : i32
    %c0_i32_1 = arith.constant 0 : i32
    return %c0_i32, %c0_i32_0 : i32, i32
  }
  func.func @transform_5(%arg0: i32, %arg1: i32) -> (i32, i32) {
    %c0_i32 = arith.constant 0 : i32
    %c0_i32_0 = arith.constant 0 : i32
    return %arg0, %c0_i32 : i32, i32
  }
}

</mosaic_0001>

<llo_original>
// kernel: tpu_custom_call.1
$region0: #{tpu_custom_call.1}
  #allocation0 [shape = 'u32[]', space=smem, size = 0x4, offset = 0x4, fixed_abs, tag = 'smem constant byte address 0x4 - core index']
  #allocation1 [shape = 'u32[144,128]{1,0:T(1,128)}', space=vmem, size = 0x12000, scoped, tag = 'internal scratch']
  %s0 = inlined_call_operand.hbm [shape: bf16[16,128], index: 0, kind: input, shape index: {}]
  %s1 = inlined_call_operand.hbm [shape: bf16[128,128], index: 1, kind: input, shape index: {}]
  %s2 = inlined_call_operand.vmem [shape: f32[1,128], index: 2, kind: input, shape index: {}]
  %s3 = inlined_call_operand.hbm [shape: bf16[128,128], index: 3, kind: input, shape index: {}]
  %s4 = inlined_call_operand.vmem [shape: f32[1,128], index: 4, kind: input, shape index: {}]
  %s5 = inlined_call_operand.hbm [shape: f32[16,128], index: 5, kind: output, shape index: {}]
  %s6 = sld [smem:[#allocation0]]
  $region46: #{tpu_custom_call.1} parent=0
    _
  %s8 = ssub.s32 1, %s6
  %s9 = scalar_select 0, %s8, %s6
  $region1: #{tpu_custom_call.1} parent=0
    #allocation2 [shape = 'u8[4096]{0}', space=vmem, size = 0x1000, scoped, tag = 'input window, operand 0, single buffered']
    #allocation3 [shape = 's32[1]{0}', space=sflag, size = 0x4, scoped, tag = 'scoped memory for tpu_custom_call.1']
    #allocation4 [shape = 's32[1]{0}', space=sflag, size = 0x4, scoped, tag = 'scoped memory for tpu_custom_call.1']
    #allocation5 [shape = 'u8[32768]{0}', space=vmem, size = 0x8000, scoped, tag = 'input window, operand 1, single buffered']
    #allocation6 [shape = 's32[1]{0}', space=sflag, size = 0x4, scoped, tag = 'scoped memory for tpu_custom_call.1']
    #allocation7 [shape = 'u8[32768]{0}', space=vmem, size = 0x8000, scoped, tag = 'input window, operand 3, single buffered']
    #allocation8 [shape = 'u8[8192]{0}', space=vmem, size = 0x2000, scoped, tag = 'output window, operand 0, single buffered']
    %10 = vsyncpa [#allocation3], 0
    %11 = vsyncpa [#allocation6], 0
    %12 = vsyncpa [#allocation4], 0
    // Predicated region
    $region2: #{tpu_custom_call.1} parent=1 // pred_check
      _
    $region3: #{tpu_custom_call.1} parent=1 // pred_check_branch
      %14 = sbr.rel (0) target = $region5
    $region4: #{tpu_custom_call.1} parent=1 // pred_region
      %s16 = ssub.s32 128, 128
      %17 = vsyncadd [#allocation3], %s16
      %s18 = sshll.u32 [#allocation2], 4
      %s19 = int_to_ptr.vmem [resolvable:$true] %s18
      %24 = dma.hbm_to_vmem [thread:$0]  %s0, 128, %s19, [#allocation3], 64, 64, 4
    $region5: #{tpu_custom_call.1} parent=1 // pred_fallthru
      _
    // Predicated region
    $region6: #{tpu_custom_call.1} parent=1 // pred_check
      _
    $region7: #{tpu_custom_call.1} parent=1 // pred_check_branch
      %26 = sbr.rel (0) target = $region9
    $region8: #{tpu_custom_call.1} parent=1 // pred_region
      %s28 = ssub.s32 1024, 1024
      %29 = vsyncadd [#allocation6], %s28
      %s30 = sshll.u32 [#allocation5], 4
      %s31 = int_to_ptr.vmem [resolvable:$true] %s30
      %36 = dma.hbm_to_vmem [thread:$0]  %s1, 1024, %s31, [#allocation6], 64, 64, 4
    $region9: #{tpu_custom_call.1} parent=1 // pred_fallthru
      _
    // Predicated region
    $region10: #{tpu_custom_call.1} parent=1 // pred_check
      _
    $region11: #{tpu_custom_call.1} parent=1 // pred_check_branch
      %38 = sbr.rel (0) target = $region13
    $region12: #{tpu_custom_call.1} parent=1 // pred_region
      _
    $region13: #{tpu_custom_call.1} parent=1 // pred_fallthru
      _
    // Predicated region
    $region14: #{tpu_custom_call.1} parent=1 // pred_check
      _
    $region15: #{tpu_custom_call.1} parent=1 // pred_check_branch
      %40 = sbr.rel (0) target = $region17
    $region16: #{tpu_custom_call.1} parent=1 // pred_region
      %s42 = ssub.s32 1024, 1024
      %43 = vsyncadd [#allocation6], %s42
      %s44 = sshll.u32 [#allocation7], 4
      %s45 = int_to_ptr.vmem [resolvable:$true] %s44
      %50 = dma.hbm_to_vmem [thread:$0]  %s3, 1024, %s45, [#allocation6], 64, 64, 4
    $region17: #{tpu_custom_call.1} parent=1 // pred_fallthru
      _
    // Predicated region
    $region18: #{tpu_custom_call.1} parent=1 // pred_check
      _
    $region19: #{tpu_custom_call.1} parent=1 // pred_check_branch
      %52 = sbr.rel (0) target = $region21
    $region20: #{tpu_custom_call.1} parent=1 // pred_region
      _
    $region21: #{tpu_custom_call.1} parent=1 // pred_fallthru
      _
    // Predicated region
    $region22: #{tpu_custom_call.1} parent=1 // pred_check
      _
    $region23: #{tpu_custom_call.1} parent=1 // pred_check_branch
      %54 = sbr.rel (0) target = $region25
    $region24: #{tpu_custom_call.1} parent=1 // pred_region
      %55 = dma.done [#allocation3], 128
    $region25: #{tpu_custom_call.1} parent=1 // pred_fallthru
      _
    // Predicated region
    $region26: #{tpu_custom_call.1} parent=1 // pred_check
      _
    $region27: #{tpu_custom_call.1} parent=1 // pred_check_branch
      %57 = sbr.rel (0) target = $region29
    $region28: #{tpu_custom_call.1} parent=1 // pred_region
      %58 = dma.done [#allocation6], 1024
    $region29: #{tpu_custom_call.1} parent=1 // pred_fallthru
      _
    // Predicated region
    $region30: #{tpu_custom_call.1} parent=1 // pred_check
      _
    $region31: #{tpu_custom_call.1} parent=1 // pred_check_branch
      %60 = sbr.rel (0) target = $region33
    $region32: #{tpu_custom_call.1} parent=1 // pred_region
      %61 = dma.done [#allocation6], 1024
    $region33: #{tpu_custom_call.1} parent=1 // pred_fallthru
      _
    %p63 = scmp.eq.s32.totalorder 0, 0
    // Predicated region
    $region34: #{tpu_custom_call.1} parent=1 // pred_check
      %p64 = pneg %p63
    $region35: #{tpu_custom_call.1} parent=1 // pred_check_branch
      %66 = sbr.rel (%p64) target = $region37
    $region36: #{tpu_custom_call.1} parent=1 // pred_region
      %v67 = vld [vmem:[%s4] sm:$0x1]
      %v68 = vadd.f32 %v67, 0.0
      %v70 = vlaneseq
      %v71 = vshrl.u32 %v70, 7
      %v72 = vsub.s32 0, %v71
      %v73 = vrot.slane %v68, %v72
      %75 = vst [vmem:[#allocation8] sm:$0xff] %v73
      %76 = vst [vmem:[#allocation8 + $0x8] sm:$0xff] %v73
    $region37: #{tpu_custom_call.1} parent=1 // pred_fallthru
      _
    %v77 = vld [vmem:[#allocation2] sm:$0xf]
    %v78 = vld [vmem:[#allocation2 + $0x4] sm:$0xf]
    %v79 = vld [vmem:[#allocation5] sm:$0xf]
    %v80 = vld [vmem:[#allocation5 + $0x4] sm:$0xf]
    %v81 = vld [vmem:[#allocation5 + $0x8] sm:$0xf]
    %v82 = vld [vmem:[#allocation5 + $0xc] sm:$0xf]
    %v83 = vld [vmem:[#allocation5 + $0x10] sm:$0xf]
    %v84 = vld [vmem:[#allocation5 + $0x14] sm:$0xf]
    %v85 = vld [vmem:[#allocation5 + $0x18] sm:$0xf]
    %v86 = vld [vmem:[#allocation5 + $0x1c] sm:$0xf]
    %v87 = vld [vmem:[#allocation5 + $0x20] sm:$0xf]
    %v88 = vld [vmem:[#allocation5 + $0x24] sm:$0xf]
    %v89 = vld [vmem:[#allocation5 + $0x28] sm:$0xf]
    %v90 = vld [vmem:[#allocation5 + $0x2c] sm:$0xf]
    %v91 = vld [vmem:[#allocation5 + $0x30] sm:$0xf]
    %v92 = vld [vmem:[#allocation5 + $0x34] sm:$0xf]
    %v93 = vld [vmem:[#allocation5 + $0x38] sm:$0xf]
    %v94 = vld [vmem:[#allocation5 + $0x3c] sm:$0xf]
    %v95 = vld [vmem:[%s2] sm:$0x1]
    %v97 = vlaneseq
    %v98 = vshrl.u32 %v97, 7
    %v99 = vsub.s32 0, %v98
    %v100 = vrot.slane %v95, %v99
    %v104 = vunpack.c.l.b16 %v77
    %v105 = vunpack.c.l.b16 %v78
    %v106 = vpack.c.b16 %v105, %v104
    %v124 = vunpack.c.l.b16 %v79
    %v125 = vunpack.c.l.b16 %v80
    %v126 = vunpack.c.l.b16 %v81
    %v127 = vunpack.c.l.b16 %v82
    %v128 = vunpack.c.l.b16 %v83
    %v129 = vunpack.c.l.b16 %v84
    %v130 = vunpack.c.l.b16 %v85
    %v131 = vunpack.c.l.b16 %v86
    %v132 = vunpack.c.l.b16 %v87
    %v133 = vunpack.c.l.b16 %v88
    %v134 = vunpack.c.l.b16 %v89
    %v135 = vunpack.c.l.b16 %v90
    %v136 = vunpack.c.l.b16 %v91
    %v137 = vunpack.c.l.b16 %v92
    %v138 = vunpack.c.l.b16 %v93
    %v139 = vunpack.c.l.b16 %v94
    %v140 = vpack.c.b16 %v125, %v124
    %v141 = vpack.c.b16 %v127, %v126
    %v142 = vpack.c.b16 %v129, %v128
    %v143 = vpack.c.b16 %v131, %v130
    %v144 = vpack.c.b16 %v133, %v132
    %v145 = vpack.c.b16 %v135, %v134
    %v146 = vpack.c.b16 %v137, %v136
    %v147 = vpack.c.b16 %v139, %v138
    %156 = vmatprep.subr.bf16.mxu0 0
    %157 = vmatpush1.bf16.msra.mxu0 %v147
    %158 = vmatprep.subr.bf16.mxu0 0
    %159 = vmatpush1.bf16.msra.mxu0 %v146
    %160 = vmatprep.subr.bf16.mxu0 0
    %161 = vmatpush1.bf16.msra.mxu0 %v145
    %162 = vmatprep.subr.bf16.mxu0 0
    %163 = vmatpush1.bf16.msra.mxu0 %v144
    %164 = vmatprep.subr.bf16.mxu0 0
    %165 = vmatpush1.bf16.msra.mxu0 %v143
    %166 = vmatprep.subr.bf16.mxu0 0
    %167 = vmatpush1.bf16.msra.mxu0 %v142
    %168 = vmatprep.subr.bf16.mxu0 0
    %169 = vmatpush1.bf16.msra.mxu0 %v141
    %170 = vmatprep.subr.bf16.mxu0 0
    %171 = vmatpush1.bf16.msra.mxu0 %v140
    %172 = vmatprep.subr.bf16.mxu0 0
    %173 = vmatpush2.bf16.msra.mxu0 0
    %174 = vmatprep.subr.bf16.mxu0 0
    %175 = vmatpush2.bf16.msra.mxu0 0
    %176 = vmatprep.subr.bf16.mxu0 0
    %177 = vmatpush2.bf16.msra.mxu0 0
    %178 = vmatprep.subr.bf16.mxu0 0
    %179 = vmatpush2.bf16.msra.mxu0 0
    %180 = vmatprep.subr.bf16.mxu0 0
    %181 = vmatpush2.bf16.msra.mxu0 0
    %182 = vmatprep.subr.bf16.mxu0 0
    %183 = vmatpush2.bf16.msra.mxu0 0
    %184 = vmatprep.subr.bf16.mxu0 0
    %185 = vmatpush2.bf16.msra.mxu0 0
    %186 = vmatprep.subr.bf16.mxu0 0
    %187 = vmatpush2.bf16.msra.mxu0 0
    %188 = vmatprep.mubr.bf16.mxu0 0
    %189 = vmatmul.mubr.bf16.gmra.mxu0 %v106
    %v190 = vpop.f32.mrf.mxu0
    %v191 = vadd.f32 %v100, %v190
    %v192 = vpop.f32.mrf.mxu0
    %v193 = vpop.f32.mrf.mxu0
    %v194 = vadd.f32 %v100, %v193
    %v195 = vpop.f32.mrf.mxu0
    %196 = vdwg.mxu0
    %v197 = vmax.f32 %v191, 0.0
    %v198 = vmax.f32 %v194, 0.0
    %v199 = vld [vmem:[#allocation8] sm:$0xff]
    %v200 = vld [vmem:[#allocation8 + $0x8] sm:$0xff]
    %v201 = vpack.c.bf16 %v198, %v197
    %v202 = vld [vmem:[#allocation7] sm:$0xf]
    %v203 = vld [vmem:[#allocation7 + $0x4] sm:$0xf]
    %v204 = vld [vmem:[#allocation7 + $0x8] sm:$0xf]
    %v205 = vld [vmem:[#allocation7 + $0xc] sm:$0xf]
    %v206 = vld [vmem:[#allocation7 + $0x10] sm:$0xf]
    %v207 = vld [vmem:[#allocation7 + $0x14] sm:$0xf]
    %v208 = vld [vmem:[#allocation7 + $0x18] sm:$0xf]
    %v209 = vld [vmem:[#allocation7 + $0x1c] sm:$0xf]
    %v210 = vld [vmem:[#allocation7 + $0x20] sm:$0xf]
    %v211 = vld [vmem:[#allocation7 + $0x24] sm:$0xf]
    %v212 = vld [vmem:[#allocation7 + $0x28] sm:$0xf]
    %v213 = vld [vmem:[#allocation7 + $0x2c] sm:$0xf]
    %v214 = vld [vmem:[#allocation7 + $0x30] sm:$0xf]
    %v215 = vld [vmem:[#allocation7 + $0x34] sm:$0xf]
    %v216 = vld [vmem:[#allocation7 + $0x38] sm:$0xf]
    %v217 = vld [vmem:[#allocation7 + $0x3c] sm:$0xf]
    %v234 = vunpack.c.l.b16 %v202
    %v235 = vunpack.c.l.b16 %v203
    %v236 = vunpack.c.l.b16 %v204
    %v237 = vunpack.c.l.b16 %v205
    %v238 = vunpack.c.l.b16 %v206
    %v239 = vunpack.c.l.b16 %v207
    %v240 = vunpack.c.l.b16 %v208
    %v241 = vunpack.c.l.b16 %v209
    %v242 = vunpack.c.l.b16 %v210
    %v243 = vunpack.c.l.b16 %v211
    %v244 = vunpack.c.l.b16 %v212
    %v245 = vunpack.c.l.b16 %v213
    %v246 = vunpack.c.l.b16 %v214
    %v247 = vunpack.c.l.b16 %v215
    %v248 = vunpack.c.l.b16 %v216
    %v249 = vunpack.c.l.b16 %v217
    %v250 = vpack.c.b16 %v235, %v234
    %v251 = vpack.c.b16 %v237, %v236
    %v252 = vpack.c.b16 %v239, %v238
    %v253 = vpack.c.b16 %v241, %v240
    %v254 = vpack.c.b16 %v243, %v242
    %v255 = vpack.c.b16 %v245, %v244
    %v256 = vpack.c.b16 %v247, %v246
    %v257 = vpack.c.b16 %v249, %v248
    %266 = vmatprep.subr.bf16.mxu0 0
    %267 = vmatpush1.bf16.msra.mxu0 %v257
    %268 = vmatprep.subr.bf16.mxu0 0
    %269 = vmatpush1.bf16.msra.mxu0 %v256
    %270 = vmatprep.subr.bf16.mxu0 0
    %271 = vmatpush1.bf16.msra.mxu0 %v255
    %272 = vmatprep.subr.bf16.mxu0 0
    %273 = vmatpush1.bf16.msra.mxu0 %v254
    %274 = vmatprep.subr.bf16.mxu0 0
    %275 = vmatpush1.bf16.msra.mxu0 %v253
    %276 = vmatprep.subr.bf16.mxu0 0
    %277 = vmatpush1.bf16.msra.mxu0 %v252
    %278 = vmatprep.subr.bf16.mxu0 0
    %279 = vmatpush1.bf16.msra.mxu0 %v251
    %280 = vmatprep.subr.bf16.mxu0 0
    %281 = vmatpush1.bf16.msra.mxu0 %v250
    %282 = vmatprep.subr.bf16.mxu0 0
    %283 = vmatpush2.bf16.msra.mxu0 0
    %284 = vmatprep.subr.bf16.mxu0 0
    %285 = vmatpush2.bf16.msra.mxu0 0
    %286 = vmatprep.subr.bf16.mxu0 0
    %287 = vmatpush2.bf16.msra.mxu0 0
    %288 = vmatprep.subr.bf16.mxu0 0
    %289 = vmatpush2.bf16.msra.mxu0 0
    %290 = vmatprep.subr.bf16.mxu0 0
    %291 = vmatpush2.bf16.msra.mxu0 0
    %292 = vmatprep.subr.bf16.mxu0 0
    %293 = vmatpush2.bf16.msra.mxu0 0
    %294 = vmatprep.subr.bf16.mxu0 0
    %295 = vmatpush2.bf16.msra.mxu0 0
    %296 = vmatprep.subr.bf16.mxu0 0
    %297 = vmatpush2.bf16.msra.mxu0 0
    %298 = vmatprep.mubr.bf16.mxu0 0
    %299 = vmatmul.mubr.bf16.gmra.mxu0 %v201
    %v300 = vpop.f32.mrf.mxu0
    %v301 = vadd.f32 0.0, %v300
    %v302 = vpop.f32.mrf.mxu0
    %v303 = vpop.f32.mrf.mxu0
    %v304 = vadd.f32 0.0, %v303
    %v305 = vpop.f32.mrf.mxu0
    %306 = vdwg.mxu0
    %v307 = vadd.f32 %v199, %v301
    %v308 = vadd.f32 %v200, %v304
    %309 = vst [vmem:[#allocation8] sm:$0xff] %v307
    %310 = vst [vmem:[#allocation8 + $0x8] sm:$0xff] %v308
    // Predicated region
    $region38: #{tpu_custom_call.1} parent=1 // pred_check
      _
    $region39: #{tpu_custom_call.1} parent=1 // pred_check_branch
      %312 = sbr.rel (0) target = $region41
    $region40: #{tpu_custom_call.1} parent=1 // pred_region
      %s314 = ssub.s32 256, 256
      %315 = vsyncadd [#allocation4], %s314
      %s316 = sshll.u32 [#allocation8], 4
      %s317 = int_to_ptr.vmem [resolvable:$true] %s316
      %322 = dma.vmem_to_hbm [thread:$0]  %s317, 256, %s5, [#allocation4], 128, 128, 8
    $region41: #{tpu_custom_call.1} parent=1 // pred_fallthru
      _
    // Predicated region
    $region42: #{tpu_custom_call.1} parent=1 // pred_check
      _
    $region43: #{tpu_custom_call.1} parent=1 // pred_check_branch
      %324 = sbr.rel (0) target = $region45
    $region44: #{tpu_custom_call.1} parent=1 // pred_region
      %325 = dma.done [#allocation4], 256
    $region45: #{tpu_custom_call.1} parent=1 // pred_fallthru
      _
    %326 = vsyncpa [#allocation3], 1
    %327 = vsyncpa [#allocation6], 1
    %328 = vsyncpa [#allocation4], 1

</llo_original>
